<compile_context>
chip_gen: v6e
topology: v6e:2x2x1
jax: 0.10.0
libtpu: 0.0.40
codegen_flags: <defaults>
</compile_context>

<pallas_src>
import jax
import jax.numpy as jnp
from jax.experimental import pallas as pl
from jax.experimental.pallas import tpu as pltpu

_BLOCK_BUDGET_BYTES = 4 * 1024 * 1024   # per pipelined input buffer (padded)
_VMEM_LIMIT_BYTES = 48 * 1024 * 1024    # < v7x 64 MiB physical, << v5e/v6e 128 MiB


def _make_kernel(H, W, use_roll):
    def kernel(x_ref, o_ref):
        x = x_ref[...].astype(jnp.float32)            # (bp, H, W), compute in f32

        if use_roll:
            # Tile-aligned plane: full-lane-width horizontal stencil via an XLU
            # roll (separate VLIW slot) instead of lane-misaligned slices.
            bp = x.shape[0]
            x2 = x.reshape(bp * H, W)                 # free: H % 8 == 0
            # right neighbour: roll(x, W-1)[c] == x[(c+1) % W]
            dh = (x2 - pltpu.roll(x2, shift=W - 1, axis=1)).reshape(bp, H, W)
            # vertical forward difference: cheap sublane shift, full lane width
            dv = x[:, :-1, :] - x[:, 1:, :]           # (bp, H-1, W)
            dht = dh[:, :-1, :]                       # rows 0..H-2 only
            col = jax.lax.broadcasted_iota(jnp.int32, (1, W), 1)
            s = jnp.where(col < W - 1, dv * dv + dht * dht, 0.0)
        else:
            # Unaligned plane: sliced stencil over the valid region (no mask).
            c = x[:, :-1, :-1]                        # x[i, j]
            dv = c - x[:, 1:, :-1]                    # x[i, j] - x[i+1, j]
            dh = c - x[:, :-1, 1:]                    # x[i, j] - x[i, j+1]
            s = dv * dv + dh * dh

        # s ** 1.25 == s * s**0.25 ; exact at s == 0 (sqrt maps to the EUP).
        total = jnp.sum(s * jnp.sqrt(jnp.sqrt(s)))
        o_ref[...] = total + jnp.zeros(o_ref.shape, o_ref.dtype)

    return kernel


def _pick_block_planes(nc, plane_bytes, max_block_planes=None):
    """Largest divisor of nc whose (8,128)-padded block fits the VMEM budget."""
    cap = max(1, _BLOCK_BUDGET_BYTES // max(plane_bytes, 1))
    if max_block_planes is not None:
        cap = min(cap, max_block_planes)
    cap = max(1, min(cap, nc))
    for d in range(cap, 0, -1):
        if nc % d == 0:
            return d
    return 1


def regularization_loss(x, *, max_block_planes=None):
    """Pallas TPU forward of RegularizationLoss for NCHW input x."""
    N, C, H, W = x.shape
    if H < 2 or W < 2:
        # Empty difference stencil -> loss is exactly 0 (matches PyTorch).
        return jnp.zeros((), jnp.float32)

    nc = N * C
    xf = x.reshape(nc, H, W)                          # free reshape, keep dtype

    itemsize = jnp.dtype(x.dtype).itemsize
    rows_pad = -(-H // 8) * 8
    cols_pad = -(-W // 128) * 128
    plane_bytes = rows_pad * cols_pad * itemsize      # padded VMEM plane bytes
    bp = _pick_block_planes(nc, plane_bytes, max_block_planes)
    num_blocks = nc // bp

    # Full-width roll stencil only when the plane is (8,128) tile aligned.
    use_roll = (H % 8 == 0) and (W % 128 == 0)
    kernel = _make_kernel(H, W, use_roll)

    numel = nc * H * W
    out = pl.pallas_call(
        kernel,
        out_shape=jax.ShapeDtypeStruct((num_blocks, 1, 1), jnp.float32),
        grid=(num_blocks,),
        in_specs=[pl.BlockSpec((bp, H, W), lambda i: (i, 0, 0))],
        out_specs=pl.BlockSpec((1, 1, 1), lambda i: (i, 0, 0)),
        compiler_params=pltpu.CompilerParams(
            dimension_semantics=("parallel",),
            vmem_limit_bytes=_VMEM_LIMIT_BYTES),
        cost_estimate=pl.CostEstimate(
            flops=8 * numel,
            transcendentals=2 * numel,
            bytes_accessed=numel * itemsize + num_blocks * 4),
    )(xf)
    # Tiny final reduction over the per-block partial sums.
    return jnp.sum(out)


# ----------------------------------------------------------------------------
# Self-test
# ----------------------------------------------------------------------------
def _ref_loss(t):
    a = jnp.square(t[:, :, :-1, :-1] - t[:, :, 1:, :-1])
    b = jnp.square(t[:, :, :-1, :-1] - t[:, :, :-1, 1:])
    return jnp.sum((a + b) ** 1.25)


def _check(got, want, tag):
    got = float(got)
    want = float(want)
    rel = abs(got - want) / max(abs(want), 1e-6)
    assert rel < 1e-3, (tag, got, want, rel)


if __name__ == "__main__":
    key = jax.random.PRNGKey(0)
    k1, k2 = jax.random.split(key)

    # Case 1: 16x16 planes (lane-unaligned -> sliced stencil).  Forcing 2-plane
    # blocks gives a 4-step "parallel" grid with per-block partial sums.
    x1 = jax.random.normal(k1, (2, 4, 16, 16), jnp.float32)
    loss1 = jax.jit(lambda t: regularization_loss(t, max_block_planes=2))(x1)
    jax.block_until_ready(loss1)
    _check(loss1, _ref_loss(x1), "unaligned/slice path")

    # Case 2: 16x128 planes (tile aligned -> full-width roll + mask stencil),
    # 2-step parallel grid.
    x2 = jax.random.normal(k2, (1, 2, 16, 128), jnp.float32)
    loss2 = jax.jit(lambda t: regularization_loss(t, max_block_planes=1))(x2)
    jax.block_until_ready(loss2)
    _check(loss2, _ref_loss(x2), "aligned/roll path")

    print("KERNEL_OK")
</pallas_src>

<mosaic_0001>
module attributes {stable_mosaic.version = 11 : i64} {
  func.func @kernel(%arg0: i32, %arg1: memref<2x16x16xf32, #tpu.memory_space<vmem>>, %arg2: memref<1x1x1xf32, #tpu.memory_space<vmem>>) attributes {dimension_semantics = [#tpu.dimension_semantics<parallel>], iteration_bounds = array<i64: 4>, scalar_prefetch = 0 : i64, scratch_operands = 0 : i64, tpu.core_type = #tpu.core_type<tc>, window_params = [{transform_indices = @transform_0, window_bounds = array<i64: 2, 16, 16>}, {transform_indices = @transform_1, window_bounds = array<i64: 1, 1, 1>}]} {
    %c0 = arith.constant 0 : index
    %c0_0 = arith.constant 0 : index
    %c0_1 = arith.constant 0 : index
    %0 = vector.load %arg1[%c0, %c0_0, %c0_1] : memref<2x16x16xf32, #tpu.memory_space<vmem>>, vector<2x16x16xf32>
    %1 = vector.extract_strided_slice %0 {offsets = [0, 0, 0], sizes = [2, 15, 15], strides = [1, 1, 1]} : vector<2x16x16xf32> to vector<2x15x15xf32>
    %2 = vector.extract_strided_slice %0 {offsets = [0, 1, 0], sizes = [2, 15, 15], strides = [1, 1, 1]} : vector<2x16x16xf32> to vector<2x15x15xf32>
    %3 = arith.subf %1, %2 : vector<2x15x15xf32>
    %4 = vector.extract_strided_slice %0 {offsets = [0, 0, 1], sizes = [2, 15, 15], strides = [1, 1, 1]} : vector<2x16x16xf32> to vector<2x15x15xf32>
    %5 = arith.subf %1, %4 : vector<2x15x15xf32>
    %6 = arith.mulf %3, %3 : vector<2x15x15xf32>
    %7 = arith.mulf %5, %5 : vector<2x15x15xf32>
    %8 = arith.addf %6, %7 : vector<2x15x15xf32>
    %9 = math.sqrt %8 : vector<2x15x15xf32>
    %10 = math.sqrt %9 : vector<2x15x15xf32>
    %11 = arith.mulf %8, %10 : vector<2x15x15xf32>
    %12 = vector.shape_cast %11 : vector<2x15x15xf32> to vector<1x2x15x15xf32>
    %cst = arith.constant dense<0.000000e+00> : vector<1xf32>
    %13 = vector.multi_reduction <add>, %12, %cst [1, 2, 3] : vector<1x2x15x15xf32> to vector<1xf32>
    %14 = vector.shape_cast %13 : vector<1xf32> to vector<1x1x1x1xf32>
    %15 = vector.extract %14[0, 0, 0, 0] : f32 from vector<1x1x1x1xf32>
    %cst_2 = arith.constant 0.000000e+00 : f32
    %16 = vector.broadcast %cst_2 : f32 to vector<1x1x1xf32>
    %17 = vector.broadcast %15 : f32 to vector<1x1x1xf32>
    %18 = arith.addf %17, %16 : vector<1x1x1xf32>
    %c0_3 = arith.constant 0 : index
    %c0_4 = arith.constant 0 : index
    %c0_5 = arith.constant 0 : index
    %19 = vector.load %arg2[%c0_3, %c0_4, %c0_5] : memref<1x1x1xf32, #tpu.memory_space<vmem>>, vector<1x1x1xf32>
    tpu.vector_store %arg2[%c0_3, %c0_4, %c0_5], %18 {strides = array<i32>} : memref<1x1x1xf32, #tpu.memory_space<vmem>>, vector<1x1x1xf32>,
    return
  }
  func.func @transform_0(%arg0: i32) -> (i32, i32, i32) {
    %c0_i32 = arith.constant 0 : i32
    %c0_i32_0 = arith.constant 0 : i32
    %c0_i32_1 = arith.constant 0 : i32
    return %arg0, %c0_i32, %c0_i32_0 : i32, i32, i32
  }
  func.func @transform_1(%arg0: i32) -> (i32, i32, i32) {
    %c0_i32 = arith.constant 0 : i32
    %c0_i32_0 = arith.constant 0 : i32
    %c0_i32_1 = arith.constant 0 : i32
    return %arg0, %c0_i32, %c0_i32_0 : i32, i32, i32
  }
}

</mosaic_0001>

<llo_original>
// kernel: _lambda_.1
$region0: #{_lambda_.1}
  #allocation0 [shape = 'u32[]', space=smem, size = 0x4, offset = 0x4, fixed_abs, tag = 'smem constant byte address 0x4 - core index']
  #allocation1 [shape = 'u32[144,128]{1,0:T(1,128)}', space=vmem, size = 0x12000, scoped, tag = 'internal scratch']
  %s0 = inlined_call_operand.hbm [shape: f32[8,16,16], index: 0, kind: input, shape index: {}]
  %s1 = inlined_call_operand.vmem [shape: f32[4,1,1], index: 1, kind: output, shape index: {}]
  %s2 = sld [smem:[#allocation0]]
  $region41: #{_lambda_.1} parent=0
    _
  %s4 = ssub.s32 1, %s2
  %s5 = scalar_select 0, %s4, %s2
  $region1: #{_lambda_.1} parent=0
    #allocation2 [shape = 'u8[32768]{0}', space=vmem, size = 0x8000, scoped, tag = 'input window, operand 0']
    #allocation3 [shape = 's32[2]{0}', space=sflag, size = 0x8, scoped, tag = 'scoped memory for _lambda_.1']
    %6 = vsyncpa [#allocation3], 0
    %s7 = scalar_lea.sflag [#allocation3], 1
    %8 = vsyncpa %s7, 0
    loop: start=0, step=1, limit=6
    $region2: #{_lambda_.1} parent=1 // loop_pre_header
      _
    $region3: #{_lambda_.1} parent=1 // loop_header
      %s10 = sphi 0, %s14
      %p11 = scmp.ge.s32.totalorder %s10, 6
      %s20 = sphi 0, %s22
      %s23 = sphi 0, %s20
      %s24 = sphi 0, %s23
      %s40 = sphi 0, %s24
      %s46 = sphi 0, %s48
      %s49 = sphi 0, %s46
      %s50 = sphi 0, %s49
      %s66 = sphi 0, %s50
    $region4: #{_lambda_.1} parent=1 // loop_header_branch
      %13 = sbr.rel (%p11) target = $region8
    $region5: #{_lambda_.1} parent=1 // loop_body
      %s15 = ssub.s32 %s10, 1
      %s16 = ssub.s32 %s10, 2
      %s17 = sadd.s32 %s10, 1
      %s18 = ssub.s32 %s10, %s17
      %p19 = scmp.eq.s32.totalorder %s18, 0
      %s21 = sadd.s32 %s20, 1
      %s22 = scalar_select %p19, %s20, %s21
      %p25 = pneg %p19
      %p26 = scmp.eq.s32.totalorder %s10, 3
      %p27 = por %p25, %p26
      %p28 = scmp.ne.s32.totalorder %s20, %s23
      %p29 = scmp.eq.s32.totalorder %s10, 0
      %p30 = por %p28, %p29
      %p31 = scmp.ne.s32.totalorder %s20, %s23
      %p32 = scmp.eq.s32.totalorder %s15, 3
      %p33 = por %p31, %p32
      %p34 = scmp.ne.s32.totalorder %s23, %s24
      %p35 = scmp.eq.s32.totalorder %s15, 0
      %p36 = por %p34, %p35
      %p37 = scmp.ne.s32.totalorder %s23, %s24
      %p38 = scmp.eq.s32.totalorder %s16, 3
      %p39 = por %p37, %p38
      %p41 = scmp.ne.s32.totalorder %s24, %s40
      %p42 = scmp.eq.s32.totalorder %s16, 0
      %p43 = por %p41, %p42
      %s44 = ssub.s32 %s10, %s17
      %p45 = scmp.eq.s32.totalorder %s44, 0
      %s47 = sadd.s32 %s46, 1
      %s48 = scalar_select %p45, %s46, %s47
      %p51 = pneg %p45
      %p52 = scmp.eq.s32.totalorder %s10, 3
      %p53 = por %p51, %p52
      %p54 = scmp.ne.s32.totalorder %s46, %s49
      %p55 = scmp.eq.s32.totalorder %s10, 0
      %p56 = por %p54, %p55
      %p57 = scmp.ne.s32.totalorder %s46, %s49
      %p58 = scmp.eq.s32.totalorder %s15, 3
      %p59 = por %p57, %p58
      %p60 = scmp.ne.s32.totalorder %s49, %s50
      %p61 = scmp.eq.s32.totalorder %s15, 0
      %p62 = por %p60, %p61
      %p63 = scmp.ne.s32.totalorder %s49, %s50
      %p64 = scmp.eq.s32.totalorder %s16, 3
      %p65 = por %p63, %p64
      %p67 = scmp.ne.s32.totalorder %s50, %s66
      %p68 = scmp.eq.s32.totalorder %s16, 0
      %p69 = por %p67, %p68
      %p70 = scmp.le.s32.totalorder 1, %s10
      %p71 = scmp.lt.s32.totalorder %s10, 5
      %p72 = pnand %p70, %p71
      %p73 = pneg %p72
      // Predicated region
      $region9: #{_lambda_.1} parent=5 // pred_check
        _
      $region10: #{_lambda_.1} parent=5 // pred_check_branch
        %75 = sbr.rel (%p72) target = $region12
      $region11: #{_lambda_.1} parent=5 // pred_region
        %s76 = ssub.s32 %s10, 1
      $region12: #{_lambda_.1} parent=5 // pred_fallthru
        _
      %p77 = scmp.lt.s32.totalorder %s10, 4
      // Predicated region
      $region13: #{_lambda_.1} parent=5 // pred_check
        %p78 = pneg %p77
      $region14: #{_lambda_.1} parent=5 // pred_check_branch
        %80 = sbr.rel (%p78) target = $region16
      $region15: #{_lambda_.1} parent=5 // pred_region
        // Predicated region
        $region17: #{_lambda_.1} parent=15 // pred_check
          %p81 = pneg %p30
        $region18: #{_lambda_.1} parent=15 // pred_check_branch
          %83 = sbr.rel (%p81) target = $region20
        $region19: #{_lambda_.1} parent=15 // pred_region
          %s84 = sand.u32 %s20, 1
          %s85 = scalar_lea.sflag [#allocation3], %s84
          %s86 = sand.u32 %s20, 1
          %s87 = smul.addr %s86, 32
          %s88 = scalar_lea.vmem [#allocation2], %s87
          %s89 = smul.u32 2, %s10
          %s91 = ssub.s32 512, 512
          %92 = vsyncadd %s85, %s91
          %s93 = smul.addr %s89, 2
          %s94 = smul.addr %s93, 128
          %s95 = scalar_lea.hbm %s0, %s94
          %s96 = sshll.u32 %s88, 4
          %s97 = int_to_ptr.vmem [resolvable:$true] %s96
          %102 = dma.hbm_to_vmem [thread:$0]  %s95, 512, %s97, %s85, 128, 128, 8
        $region20: #{_lambda_.1} parent=15 // pred_fallthru
          _
      $region16: #{_lambda_.1} parent=5 // pred_fallthru
        _
      %p103 = scmp.le.s32.totalorder 1, %s10
      %p104 = scmp.lt.s32.totalorder %s10, 5
      %p105 = pnand %p103, %p104
      %p106 = pneg %p105
      // Predicated region
      $region21: #{_lambda_.1} parent=5 // pred_check
        _
      $region22: #{_lambda_.1} parent=5 // pred_check_branch
        %108 = sbr.rel (%p105) target = $region24
      $region23: #{_lambda_.1} parent=5 // pred_region
        %s109 = ssub.s32 %s10, 1
        %s110 = sand.u32 %s23, 1
        %s111 = scalar_lea.sflag [#allocation3], %s110
        %s112 = sand.u32 %s23, 1
        %s113 = smul.addr %s112, 32
        %s114 = scalar_lea.vmem [#allocation2], %s113
        // Predicated region
        $region25: #{_lambda_.1} parent=23 // pred_check
          %p115 = pneg %p36
        $region26: #{_lambda_.1} parent=23 // pred_check_branch
          %117 = sbr.rel (%p115) target = $region28
        $region27: #{_lambda_.1} parent=23 // pred_region
          %118 = dma.done %s111, 512
        $region28: #{_lambda_.1} parent=23 // pred_fallthru
          _
        %s119 = sand.u32 %s23, 1
        %s120 = scalar_lea.sflag [#allocation3], %s119
        %s121 = sand.u32 %s23, 1
        %s122 = smul.addr %s121, 32
        %s123 = scalar_lea.vmem [#allocation2], %s122
        %p124 = pneg %p36
        %p125 = pneg %p33
        %p126 = pneg %p62
        %p127 = pneg %p59
        %p128 = scmp.lt.s32.totalorder %s15, 3
        %s129 = scalar_select %p128, %s15, 3
        %s130 = scalar_lea.vmem %s1, %s129
        %s131 = smul.u32 2, %s15
        %p132 = scmp.lt.s32.totalorder %s15, 3
        %s133 = scalar_select %p132, %s15, 3
        %s134 = scalar_lea.vmem %s1, %s133
        %v135 = vld [vmem:[%s114] sm:$0xff]
        %v136 = vld [vmem:[%s114 + $0x8] sm:$0xff]
        %v137 = vld [vmem:[%s114 + $0x10] sm:$0xff]
        %v138 = vld [vmem:[%s114 + $0x18] sm:$0xff]
        %vm143 = vcmask 1046528
        %v144 = vrot.slane %v135, 1
        %v145 = vrot.slane %v136, 1
        %v146 = vsel %vm143, %v144, %v145
        %v147 = vrot.slane %v137, 1
        %v148 = vrot.slane %v138, 1
        %v149 = vsel %vm143, %v147, %v148
        %v154 = vsub.f32 %v135, %v146
        %v155 = vsub.f32 %v136, %v145
        %v156 = vsub.f32 %v137, %v149
        %v157 = vsub.f32 %v138, %v148
        %158 = vrot.lane.b32.xlu0 %v135, 127
        %v159 = vpop.permute.xlu0 %158
        %160 = vrot.lane.b32.xlu0 %v136, 127
        %v161 = vpop.permute.xlu0 %160
        %162 = vrot.lane.b32.xlu0 %v137, 127
        %v163 = vpop.permute.xlu0 %162
        %164 = vrot.lane.b32.xlu0 %v138, 127
        %v165 = vpop.permute.xlu0 %164
        %v170 = vsub.f32 %v135, %v159
        %v171 = vsub.f32 %v136, %v161
        %v172 = vsub.f32 %v137, %v163
        %v173 = vsub.f32 %v138, %v165
        %v174 = vmul.f32 %v154, %v154
        %v175 = vmul.f32 %v155, %v155
        %v176 = vmul.f32 %v156, %v156
        %v177 = vmul.f32 %v157, %v157
        %v178 = vmul.f32 %v170, %v170
        %v179 = vmul.f32 %v171, %v171
        %v180 = vmul.f32 %v172, %v172
        %v181 = vmul.f32 %v173, %v173
        %v182 = vadd.f32 %v174, %v178
        %v183 = vadd.f32 %v175, %v179
        %v184 = vadd.f32 %v176, %v180
        %v185 = vadd.f32 %v177, %v181
        %v186 = vrsqrt.pop %v182
        %v187 = vmul.f32 %v182, %v186
        %vm188 = vcmp.eq.f32.partialorder %v182, inf
        %v189 = vsel %vm188, %v182, %v187
        %vm190 = vcmp.eq.f32.partialorder %v182, 0.0
        %v191 = vand.u32 %v182, 2147483648
        %v192 = vsel %vm190, %v191, %v189
        %v193 = vrsqrt.pop %v183
        %v194 = vmul.f32 %v183, %v193
        %vm195 = vcmp.eq.f32.partialorder %v183, inf
        %v196 = vsel %vm195, %v183, %v194
        %vm197 = vcmp.eq.f32.partialorder %v183, 0.0
        %v198 = vand.u32 %v183, 2147483648
        %v199 = vsel %vm197, %v198, %v196
        %v200 = vrsqrt.pop %v184
        %v201 = vmul.f32 %v184, %v200
        %vm202 = vcmp.eq.f32.partialorder %v184, inf
        %v203 = vsel %vm202, %v184, %v201
        %vm204 = vcmp.eq.f32.partialorder %v184, 0.0
        %v205 = vand.u32 %v184, 2147483648
        %v206 = vsel %vm204, %v205, %v203
        %v207 = vrsqrt.pop %v185
        %v208 = vmul.f32 %v185, %v207
        %vm209 = vcmp.eq.f32.partialorder %v185, inf
        %v210 = vsel %vm209, %v185, %v208
        %vm211 = vcmp.eq.f32.partialorder %v185, 0.0
        %v212 = vand.u32 %v185, 2147483648
        %v213 = vsel %vm211, %v212, %v210
        %v214 = vrsqrt.pop %v192
        %v215 = vmul.f32 %v192, %v214
        %vm216 = vcmp.eq.f32.partialorder %v192, inf
        %v217 = vsel %vm216, %v192, %v215
        %vm218 = vcmp.eq.f32.partialorder %v192, 0.0
        %v219 = vand.u32 %v192, 2147483648
        %v220 = vsel %vm218, %v219, %v217
        %v221 = vrsqrt.pop %v199
        %v222 = vmul.f32 %v199, %v221
        %vm223 = vcmp.eq.f32.partialorder %v199, inf
        %v224 = vsel %vm223, %v199, %v222
        %vm225 = vcmp.eq.f32.partialorder %v199, 0.0
        %v226 = vand.u32 %v199, 2147483648
        %v227 = vsel %vm225, %v226, %v224
        %v228 = vrsqrt.pop %v206
        %v229 = vmul.f32 %v206, %v228
        %vm230 = vcmp.eq.f32.partialorder %v206, inf
        %v231 = vsel %vm230, %v206, %v229
        %vm232 = vcmp.eq.f32.partialorder %v206, 0.0
        %v233 = vand.u32 %v206, 2147483648
        %v234 = vsel %vm232, %v233, %v231
        %v235 = vrsqrt.pop %v213
        %v236 = vmul.f32 %v213, %v235
        %vm237 = vcmp.eq.f32.partialorder %v213, inf
        %v238 = vsel %vm237, %v213, %v236
        %vm239 = vcmp.eq.f32.partialorder %v213, 0.0
        %v240 = vand.u32 %v213, 2147483648
        %v241 = vsel %vm239, %v240, %v238
        %v242 = vmul.f32 %v182, %v220
        %v243 = vmul.f32 %v183, %v227
        %v244 = vmul.f32 %v184, %v234
        %v245 = vmul.f32 %v185, %v241
        %vm246 = vcmask 121856
        %v247 = vsel %vm246, %v242, 0.0
        %vm248 = vcmask 120832
        %v249 = vsel %vm248, %v243, 0.0
        %v250 = vadd.f32 %v247, %v249
        %v251 = vsel %vm246, %v244, 0.0
        %v252 = vadd.f32 %v250, %v251
        %v253 = vsel %vm248, %v245, 0.0
        %v254 = vadd.f32 %v252, %v253
        %255 = vadd.xlane.f32.xlu0 %v254
        %v256 = vpop.xlane.xlu0 %255
        %v257 = vrot.slane %v256, 4
        %v258 = vadd.f32 %v256, %v257
        %v259 = vrot.slane %v258, 2
        %v260 = vadd.f32 %v258, %v259
        %v261 = vrot.slane %v260, 1
        %v262 = vadd.f32 %v260, %v261
        %s263 = vtos %v262
        %v264 = vstv %s263
        %v265 = vadd.f32 %v264, 0.0
        %vm266 = vcmask 0
        %267 = vst.msk [vmem:[%s134] sm:$0x1] %vm266, %v265
        %p268 = scmp.lt.s32.totalorder %s15, 3
        %s269 = scalar_select %p268, %s15, 3
        %s270 = scalar_lea.vmem %s1, %s269
        // Predicated region
        $region29: #{_lambda_.1} parent=23 // pred_check
          %p271 = pneg %p59
        $region30: #{_lambda_.1} parent=23 // pred_check_branch
          %273 = sbr.rel (%p271) target = $region32
        $region31: #{_lambda_.1} parent=23 // pred_region
          _
        $region32: #{_lambda_.1} parent=23 // pred_fallthru
          _
      $region24: #{_lambda_.1} parent=5 // pred_fallthru
        _
      %p274 = scmp.le.s32.totalorder 2, %s10
      // Predicated region
      $region33: #{_lambda_.1} parent=5 // pred_check
        %p275 = pneg %p274
      $region34: #{_lambda_.1} parent=5 // pred_check_branch
        %277 = sbr.rel (%p275) target = $region36
      $region35: #{_lambda_.1} parent=5 // pred_region
        %s278 = ssub.s32 %s10, 2
        // Predicated region
        $region37: #{_lambda_.1} parent=35 // pred_check
          %p279 = pneg %p65
        $region38: #{_lambda_.1} parent=35 // pred_check_branch
          %281 = sbr.rel (%p279) target = $region40
        $region39: #{_lambda_.1} parent=35 // pred_region
          %p282 = scmp.lt.s32.totalorder %s16, 3
          %s283 = scalar_select %p282, %s16, 3
          %s284 = scalar_lea.vmem %s1, %s283
        $region40: #{_lambda_.1} parent=35 // pred_fallthru
          _
      $region36: #{_lambda_.1} parent=5 // pred_fallthru
        _
    $region6: #{_lambda_.1} parent=1 // loop_footer
      %s14 = sadd.s32 1, %s10
    $region7: #{_lambda_.1} parent=1 // loop_footer_branch
      %9 = sbr.rel target = $region3
    $region8: #{_lambda_.1} parent=1 // loop_exit
      _
    %285 = vsyncpa [#allocation3], 1
    %s286 = scalar_lea.sflag [#allocation3], 1
    %287 = vsyncpa %s286, 1

</llo_original>
